<compile_context>
chip_gen: v7x
topology: tpu7x:2x2x1
jax: 0.10.0
libtpu: 0.0.40
codegen_flags: <defaults>
</compile_context>

<pallas_src>
import functools

import jax
import jax.numpy as jnp
from jax.experimental import pallas as pl
from jax.experimental.pallas import tpu as pltpu

_LANE = 128
_MIB = 1024 * 1024
# Conservative VMEM budget: well under v7x's 64 MiB/TC, and leaves plenty of
# headroom on v5e/v6e (128 MiB).
_VMEM_BUDGET = 48 * _MIB


def _round_up(x: int, m: int) -> int:
    return ((x + m - 1) // m) * m


def _mlp_kernel(*refs, n_hidden: int, compute_dtype):
    """refs = (x_ref, w0, b0, ..., w_{n-1}, b_{n-1}, w_head, b_head, out_ref).

    x_ref:    [batch_tile, ob_dim]        float32
    w_l:      [in, H_p]                   compute_dtype (bf16 or f32)
    b_l:      [1, H_p]                    float32
    w_head:   [1, H_p]                    compute_dtype (head weight as a row)
    b_head:   [1, 1]                      float32
    out_ref:  [1, batch_tile]             float32 (batch on lanes -> dense vst)
    """
    x_ref = refs[0]
    out_ref = refs[-1]
    p = refs[1:-1]

    h = x_ref[...]  # f32
    for l in range(n_hidden):
        w = p[2 * l][...]
        b = p[2 * l + 1][...]
        acc = jnp.dot(h.astype(compute_dtype), w,
                      preferred_element_type=jnp.float32)
        h = jnp.tanh(acc + b)  # f32 tanh: correct & fast on v5e/v6e/v7x

    w_head = p[2 * n_hidden][...]      # [1, H_p]
    b_head = p[2 * n_hidden + 1][...]  # [1, 1]
    # Contract the feature axis of h against the head-weight row; the result is
    # [1, batch_tile] with batch on lanes, so the output store is lane-dense.
    row = jnp.einsum("od,bd->ob", w_head, h.astype(compute_dtype),
                     preferred_element_type=jnp.float32)
    out_ref[...] = (row + b_head).astype(out_ref.dtype)


def value_critic_forward(obs, params, *, max_batch_tile=1024, use_bf16=True):
    """Run the ValueCritic MLP forward pass with a Pallas kernel.

    obs:    [B, ob_dim] float32
    params: list of (W, b) with W [in, out], b [1, out]; last out == 1.
    Returns [B, 1] float32.
    """
    B, ob_dim = obs.shape
    n_hidden = len(params) - 1
    compute_dtype = jnp.bfloat16 if use_bf16 else jnp.float32

    # --- pad hidden width to a multiple of 128 lanes (zeros stay inert). ---
    hidden_params = params[:-1]
    w_last, b_last = params[-1]               # [H, 1], [1, 1]
    if n_hidden > 0:
        H = hidden_params[0][0].shape[1]
        H_p = max(_round_up(H, _LANE), _LANE)
    else:
        H_p = ob_dim

    flat_params = []
    for li, (w, b) in enumerate(hidden_params):
        in_d, out_d = w.shape
        in_target = in_d if li == 0 else H_p
        w_p = jnp.pad(w, ((0, in_target - in_d), (0, H_p - out_d)))
        b_p = jnp.pad(b, ((0, 0), (0, H_p - out_d)))            # padded bias = 0
        flat_params.extend([w_p.astype(compute_dtype), b_p])

    head_in = w_last.shape[0]
    head_in_target = head_in if n_hidden == 0 else H_p
    w_head = jnp.pad(w_last, ((0, head_in_target - head_in), (0, 0))).T  # [1, H_p]
    flat_params.extend([w_head.astype(compute_dtype), b_last])

    weight_bytes = sum(int(a.size) * a.dtype.itemsize for a in flat_params)

    # --- batch tiling: minimal pad to 128 lanes, tile divides B_pad. ---
    B_pad = max(_round_up(B, _LANE), _LANE)
    n128 = B_pad // _LANE

    def _vmem_need(tile):
        obs_tile = tile * ob_dim * 4                  # f32 obs block
        out_tile = tile * 4                           # f32 [1, tile] block
        act = 4 * tile * max(H_p, _LANE) * 4          # f32 activation working set
        # weights single-buffered; obs/out double-buffered; + headroom
        return weight_bytes + 2 * obs_tile + 2 * out_tile + act + 2 * _MIB

    def _tile_ok(k):
        tile = k * _LANE
        if tile > max_batch_tile:
            return False
        if _vmem_need(tile) > _VMEM_BUDGET:
            return False
        # With >=256 padded rows, keep >=2 grid steps so the batch axis can
        # shard across v7x's two TensorCores (harmless on v5e/v6e).
        if n128 >= 2 and (n128 // k) < 2:
            return False
        return True

    divisors = [k for k in range(1, n128 + 1) if n128 % k == 0]
    valid = [k for k in divisors if _tile_ok(k)]
    k = max(valid) if valid else 1
    batch_tile = k * _LANE
    num_tiles = B_pad // batch_tile

    if B_pad != B:
        obs = jnp.pad(obs, ((0, B_pad - B), (0, 0)))  # <=127 rows of padding

    # --- block specs ---
    in_specs = [pl.BlockSpec((batch_tile, ob_dim), lambda i: (i, 0))]
    for arr in flat_params:
        # Constant index_map => fetched once; single buffer halves weight VMEM.
        in_specs.append(
            pl.BlockSpec(arr.shape, lambda i: (0, 0),
                         pipeline_mode=pl.Buffered(1)))
    out_spec = pl.BlockSpec((1, batch_tile), lambda i: (0, i))   # lane-dense row

    kernel = functools.partial(_mlp_kernel, n_hidden=n_hidden,
                               compute_dtype=compute_dtype)

    vmem_limit = int(min(max(_vmem_need(batch_tile), 16 * _MIB), _VMEM_BUDGET))

    out = pl.pallas_call(
        kernel,
        out_shape=jax.ShapeDtypeStruct((1, B_pad), jnp.float32),
        grid=(num_tiles,),
        in_specs=in_specs,
        out_specs=out_spec,
        compiler_params=pltpu.CompilerParams(
            dimension_semantics=("parallel",),   # shards batch tiles across TCs
            vmem_limit_bytes=vmem_limit,         # shape-derived, v7x-safe
        ),
    )(obs, *flat_params)

    # [1, B_pad] -> [B, 1]
    return out.reshape(B_pad, 1)[:B]


def init_value_critic_params(key, ob_dim, n_layers, layer_size):
    """Deterministic synthetic init matching the module's parameter shapes."""
    params = []
    in_dim = ob_dim
    dims = [layer_size] * n_layers + [1]
    for out_dim in dims:
        key, kw, kb = jax.random.split(key, 3)
        # Uniform(-1/sqrt(in), 1/sqrt(in)) like torch.nn.Linear default init.
        bound = 1.0 / jnp.sqrt(jnp.float32(in_dim))
        w = jax.random.uniform(kw, (in_dim, out_dim), jnp.float32, -bound, bound)
        b = jax.random.uniform(kb, (1, out_dim), jnp.float32, -bound, bound)
        params.append((w, b))
        in_dim = out_dim
    return params


def _reference_forward(obs, params):
    h = obs
    for (w, b) in params[:-1]:
        h = jnp.tanh(h @ w + b)
    w, b = params[-1]
    return h @ w + b


# TODO(synk): the Adam-based `update()` training step is host-side optimizer
# logic and is intentionally not translated to a Pallas kernel.

if __name__ == "__main__":
    # Small shapes consistent with the module: batch=32, ob_dim=16,
    # n_layers=2 hidden layers of size 32, scalar value output.
    B, ob_dim, n_layers, layer_size = 32, 16, 2, 32

    key = jax.random.PRNGKey(0)
    key, kobs = jax.random.split(key)
    obs = jax.random.normal(kobs, (B, ob_dim), jnp.float32)

    params = init_value_critic_params(key, ob_dim, n_layers, layer_size)
    ref = _reference_forward(obs, params)

    # Default path: bf16 matmuls with f32 accumulation.
    values_bf16 = jax.block_until_ready(value_critic_forward(obs, params))
    assert values_bf16.shape == (B, 1)
    assert jnp.allclose(values_bf16, ref, atol=3e-2, rtol=3e-2)

    # f32 compute path: bit-accurate check against the pure-JAX reference.
    values_f32 = jax.block_until_ready(
        value_critic_forward(obs, params, use_bf16=False))
    assert values_f32.shape == (B, 1)
    assert jnp.allclose(values_f32, ref, atol=1e-5, rtol=1e-5)

    print("KERNEL_OK")
</pallas_src>

<mosaic_0001>
module attributes {stable_mosaic.version = 11 : i64} {
  func.func @_mlp_kernel(%arg0: i32, %arg1: memref<128x16xf32, #tpu.memory_space<vmem>>, %arg2: memref<16x128xbf16, #tpu.memory_space<vmem>>, %arg3: memref<1x128xf32, #tpu.memory_space<vmem>>, %arg4: memref<128x128xbf16, #tpu.memory_space<vmem>>, %arg5: memref<1x128xf32, #tpu.memory_space<vmem>>, %arg6: memref<1x128xbf16, #tpu.memory_space<vmem>>, %arg7: memref<1x1xf32, #tpu.memory_space<vmem>>, %arg8: memref<1x128xf32, #tpu.memory_space<vmem>>) attributes {dimension_semantics = [#tpu.dimension_semantics<parallel>], iteration_bounds = array<i64: 1>, scalar_prefetch = 0 : i64, scratch_operands = 0 : i64, tpu.core_type = #tpu.core_type<tc>, window_params = [{transform_indices = @transform_0, window_bounds = array<i64: 128, 16>}, {pipeline_mode = #tpu.pipeline_mode<synchronous>, transform_indices = @transform_1, window_bounds = array<i64: 16, 128>}, {pipeline_mode = #tpu.pipeline_mode<synchronous>, transform_indices = @transform_2, window_bounds = array<i64: 1, 128>}, {pipeline_mode = #tpu.pipeline_mode<synchronous>, transform_indices = @transform_3, window_bounds = array<i64: 128, 128>}, {pipeline_mode = #tpu.pipeline_mode<synchronous>, transform_indices = @transform_4, window_bounds = array<i64: 1, 128>}, {pipeline_mode = #tpu.pipeline_mode<synchronous>, transform_indices = @transform_5, window_bounds = array<i64: 1, 128>}, {pipeline_mode = #tpu.pipeline_mode<synchronous>, transform_indices = @transform_6, window_bounds = array<i64: 1, 1>}, {transform_indices = @transform_7, window_bounds = array<i64: 1, 128>}]} {
    %c0 = arith.constant 0 : index
    %c0_0 = arith.constant 0 : index
    %0 = vector.load %arg1[%c0, %c0_0] : memref<128x16xf32, #tpu.memory_space<vmem>>, vector<128x16xf32>
    %c0_1 = arith.constant 0 : index
    %c0_2 = arith.constant 0 : index
    %1 = vector.load %arg2[%c0_1, %c0_2] : memref<16x128xbf16, #tpu.memory_space<vmem>>, vector<16x128xbf16>
    %c0_3 = arith.constant 0 : index
    %c0_4 = arith.constant 0 : index
    %2 = vector.load %arg3[%c0_3, %c0_4] : memref<1x128xf32, #tpu.memory_space<vmem>>, vector<1x128xf32>
    %3 = arith.truncf %0 : vector<128x16xf32> to vector<128x16xbf16>
    %cst = arith.constant dense<0.000000e+00> : vector<128x128xf32>
    %4 = tpu.matmul %3, %1, %cst {dimension_numbers = #tpu.dot_dimension_numbers<[1], [0], [0], [1], [0, 0, 1, 1], [], []>} : vector<128x16xbf16>, vector<16x128xbf16>, vector<128x128xf32> -> vector<128x128xf32>
    %5 = vector.broadcast %2 : vector<1x128xf32> to vector<128x128xf32>
    %6 = arith.addf %4, %5 : vector<128x128xf32>
    %7 = math.tanh %6 : vector<128x128xf32>
    %c0_5 = arith.constant 0 : index
    %c0_6 = arith.constant 0 : index
    %8 = vector.load %arg4[%c0_5, %c0_6] : memref<128x128xbf16, #tpu.memory_space<vmem>>, vector<128x128xbf16>
    %c0_7 = arith.constant 0 : index
    %c0_8 = arith.constant 0 : index
    %9 = vector.load %arg5[%c0_7, %c0_8] : memref<1x128xf32, #tpu.memory_space<vmem>>, vector<1x128xf32>
    %10 = arith.truncf %7 : vector<128x128xf32> to vector<128x128xbf16>
    %cst_9 = arith.constant dense<0.000000e+00> : vector<128x128xf32>
    %11 = tpu.matmul %10, %8, %cst_9 {dimension_numbers = #tpu.dot_dimension_numbers<[1], [0], [0], [1], [0, 0, 1, 1], [], []>} : vector<128x128xbf16>, vector<128x128xbf16>, vector<128x128xf32> -> vector<128x128xf32>
    %12 = vector.broadcast %9 : vector<1x128xf32> to vector<128x128xf32>
    %13 = arith.addf %11, %12 : vector<128x128xf32>
    %14 = math.tanh %13 : vector<128x128xf32>
    %c0_10 = arith.constant 0 : index
    %c0_11 = arith.constant 0 : index
    %15 = vector.load %arg6[%c0_10, %c0_11] : memref<1x128xbf16, #tpu.memory_space<vmem>>, vector<1x128xbf16>
    %c0_12 = arith.constant 0 : index
    %c0_13 = arith.constant 0 : index
    %16 = vector.load %arg7[%c0_12, %c0_13] : memref<1x1xf32, #tpu.memory_space<vmem>>, vector<1x1xf32>
    %17 = arith.truncf %14 : vector<128x128xf32> to vector<128x128xbf16>
    "tpu.trace_start"() <{level = 10 : i32, message = "od,bd->ob"}> : () -> ()
    %cst_14 = arith.constant dense<0.000000e+00> : vector<1x128xf32>
    %18 = tpu.matmul %15, %17, %cst_14 {dimension_numbers = #tpu.dot_dimension_numbers<[1], [1], [0], [0], [0, 0, 1, 0], [], []>} : vector<1x128xbf16>, vector<128x128xbf16>, vector<1x128xf32> -> vector<1x128xf32>
    "tpu.trace_stop"() : () -> ()
    %19 = vector.broadcast %16 : vector<1x1xf32> to vector<1x128xf32>
    %20 = arith.addf %18, %19 : vector<1x128xf32>
    %c0_15 = arith.constant 0 : index
    %c0_16 = arith.constant 0 : index
    %21 = vector.load %arg8[%c0_15, %c0_16] : memref<1x128xf32, #tpu.memory_space<vmem>>, vector<1x128xf32>
    tpu.vector_store %arg8[%c0_15, %c0_16], %20 {strides = array<i32>} : memref<1x128xf32, #tpu.memory_space<vmem>>, vector<1x128xf32>,
    return
  }
  func.func @transform_0(%arg0: i32) -> (i32, i32) {
    %c0_i32 = arith.constant 0 : i32
    %c0_i32_0 = arith.constant 0 : i32
    return %arg0, %c0_i32 : i32, i32
  }
  func.func @transform_1(%arg0: i32) -> (i32, i32) {
    %c0_i32 = arith.constant 0 : i32
    %c0_i32_0 = arith.constant 0 : i32
    %c0_i32_1 = arith.constant 0 : i32
    return %c0_i32, %c0_i32_0 : i32, i32
  }
  func.func @transform_2(%arg0: i32) -> (i32, i32) {
    %c0_i32 = arith.constant 0 : i32
    %c0_i32_0 = arith.constant 0 : i32
    %c0_i32_1 = arith.constant 0 : i32
    return %c0_i32, %c0_i32_0 : i32, i32
  }
  func.func @transform_3(%arg0: i32) -> (i32, i32) {
    %c0_i32 = arith.constant 0 : i32
    %c0_i32_0 = arith.constant 0 : i32
    %c0_i32_1 = arith.constant 0 : i32
    return %c0_i32, %c0_i32_0 : i32, i32
  }
  func.func @transform_4(%arg0: i32) -> (i32, i32) {
    %c0_i32 = arith.constant 0 : i32
    %c0_i32_0 = arith.constant 0 : i32
    %c0_i32_1 = arith.constant 0 : i32
    return %c0_i32, %c0_i32_0 : i32, i32
  }
  func.func @transform_5(%arg0: i32) -> (i32, i32) {
    %c0_i32 = arith.constant 0 : i32
    %c0_i32_0 = arith.constant 0 : i32
    %c0_i32_1 = arith.constant 0 : i32
    return %c0_i32, %c0_i32_0 : i32, i32
  }
  func.func @transform_6(%arg0: i32) -> (i32, i32) {
    %c0_i32 = arith.constant 0 : i32
    %c0_i32_0 = arith.constant 0 : i32
    %c0_i32_1 = arith.constant 0 : i32
    return %c0_i32, %c0_i32_0 : i32, i32
  }
  func.func @transform_7(%arg0: i32) -> (i32, i32) {
    %c0_i32 = arith.constant 0 : i32
    %c0_i32_0 = arith.constant 0 : i32
    return %c0_i32, %arg0 : i32, i32
  }
}

</mosaic_0001>

<llo_original>
// kernel: tpu_custom_call.1
$region0: #{tpu_custom_call.1}
  #allocation0 [shape = 'u32[]', space=smem, size = 0x4, offset = 0x4, fixed_abs, tag = 'smem constant byte address 0x4 - core index']
  #allocation1 [shape = 'u32[144,128]{1,0:T(1,128)}', space=vmem, size = 0x12000, scoped, tag = 'internal scratch']
  #allocation2 [shape = 'f32[1,1]{1,0:T(1,128)S(1)}', space=vmem, size = 0x200, scoped, tag = 'scoped memory for tpu_custom_call.1']
  %s0 = inlined_call_operand.vmem [shape: f32[128,16], index: 0, kind: input, shape index: {}]
  %s1 = inlined_call_operand.vmem [shape: bf16[16,128], index: 1, kind: input, shape index: {}]
  %s2 = inlined_call_operand.vmem [shape: f32[1,128], index: 2, kind: input, shape index: {}]
  %s3 = inlined_call_operand.vmem [shape: bf16[128,128], index: 3, kind: input, shape index: {}]
  %s4 = inlined_call_operand.vmem [shape: f32[1,128], index: 4, kind: input, shape index: {}]
  %s5 = inlined_call_operand.vmem [shape: bf16[1,128], index: 5, kind: input, shape index: {}]
  %s6 = inlined_call_operand.<no memory space> [shape: f32[1,1], index: 6, kind: input, shape index: {}]
  %s7 = inlined_call_operand.hbm [shape: f32[1,128], index: 7, kind: output, shape index: {}]
  %s8 = sld [smem:[#allocation0]]
  $region38: #{tpu_custom_call.1} parent=0
    _
  %s10 = ssub.s32 1, %s8
  %s11 = scalar_select 0, %s10, %s8
  %v12 = vstv %s6
  %13 = vst [vmem:[#allocation2] sm:$0x1] %v12
  $region1: #{tpu_custom_call.1} parent=0
    #allocation3 [shape = 'u8[512]{0}', space=vmem, size = 0x400, scoped, tag = 'output window, operand 0, single buffered']
    #allocation4 [shape = 's32[1]{0}', space=sflag, size = 0x4, scoped, tag = 'scoped memory for tpu_custom_call.1']
    %14 = vsyncpa [#allocation4], 0
    // Predicated region
    $region2: #{tpu_custom_call.1} parent=1 // pred_check
      _
    $region3: #{tpu_custom_call.1} parent=1 // pred_check_branch
      %16 = sbr.rel (0) target = $region5
    $region4: #{tpu_custom_call.1} parent=1 // pred_region
      _
    $region5: #{tpu_custom_call.1} parent=1 // pred_fallthru
      _
    // Predicated region
    $region6: #{tpu_custom_call.1} parent=1 // pred_check
      _
    $region7: #{tpu_custom_call.1} parent=1 // pred_check_branch
      %18 = sbr.rel (0) target = $region9
    $region8: #{tpu_custom_call.1} parent=1 // pred_region
      _
    $region9: #{tpu_custom_call.1} parent=1 // pred_fallthru
      _
    // Predicated region
    $region10: #{tpu_custom_call.1} parent=1 // pred_check
      _
    $region11: #{tpu_custom_call.1} parent=1 // pred_check_branch
      %20 = sbr.rel (0) target = $region13
    $region12: #{tpu_custom_call.1} parent=1 // pred_region
      _
    $region13: #{tpu_custom_call.1} parent=1 // pred_fallthru
      _
    // Predicated region
    $region14: #{tpu_custom_call.1} parent=1 // pred_check
      _
    $region15: #{tpu_custom_call.1} parent=1 // pred_check_branch
      %22 = sbr.rel (0) target = $region17
    $region16: #{tpu_custom_call.1} parent=1 // pred_region
      _
    $region17: #{tpu_custom_call.1} parent=1 // pred_fallthru
      _
    // Predicated region
    $region18: #{tpu_custom_call.1} parent=1 // pred_check
      _
    $region19: #{tpu_custom_call.1} parent=1 // pred_check_branch
      %24 = sbr.rel (0) target = $region21
    $region20: #{tpu_custom_call.1} parent=1 // pred_region
      _
    $region21: #{tpu_custom_call.1} parent=1 // pred_fallthru
      _
    // Predicated region
    $region22: #{tpu_custom_call.1} parent=1 // pred_check
      _
    $region23: #{tpu_custom_call.1} parent=1 // pred_check_branch
      %26 = sbr.rel (0) target = $region25
    $region24: #{tpu_custom_call.1} parent=1 // pred_region
      _
    $region25: #{tpu_custom_call.1} parent=1 // pred_fallthru
      _
    // Predicated region
    $region26: #{tpu_custom_call.1} parent=1 // pred_check
      _
    $region27: #{tpu_custom_call.1} parent=1 // pred_check_branch
      %28 = sbr.rel (0) target = $region29
    $region28: #{tpu_custom_call.1} parent=1 // pred_region
      _
    $region29: #{tpu_custom_call.1} parent=1 // pred_fallthru
      _
    %v30 = vld [vmem:[%s0] sm:$0xff]
    %v31 = vld [vmem:[%s0 + $0x8] sm:$0xff]
    %v32 = vld [vmem:[%s0 + $0x10] sm:$0xff]
    %v33 = vld [vmem:[%s0 + $0x18] sm:$0xff]
    %v34 = vld [vmem:[%s0 + $0x20] sm:$0xff]
    %v35 = vld [vmem:[%s0 + $0x28] sm:$0xff]
    %v36 = vld [vmem:[%s0 + $0x30] sm:$0xff]
    %v37 = vld [vmem:[%s0 + $0x38] sm:$0xff]
    %v38 = vld [vmem:[%s0 + $0x40] sm:$0xff]
    %v39 = vld [vmem:[%s0 + $0x48] sm:$0xff]
    %v40 = vld [vmem:[%s0 + $0x50] sm:$0xff]
    %v41 = vld [vmem:[%s0 + $0x58] sm:$0xff]
    %v42 = vld [vmem:[%s0 + $0x60] sm:$0xff]
    %v43 = vld [vmem:[%s0 + $0x68] sm:$0xff]
    %v44 = vld [vmem:[%s0 + $0x70] sm:$0xff]
    %v45 = vld [vmem:[%s0 + $0x78] sm:$0xff]
    %v46 = vld [vmem:[%s1] sm:$0xf]
    %v47 = vld [vmem:[%s1 + $0x4] sm:$0xf]
    %v48 = vld [vmem:[%s2] sm:$0x1]
    %v49 = vpack.c.bf16 %v31, %v30
    %v50 = vpack.c.bf16 %v33, %v32
    %v51 = vpack.c.bf16 %v35, %v34
    %v52 = vpack.c.bf16 %v37, %v36
    %v53 = vpack.c.bf16 %v39, %v38
    %v54 = vpack.c.bf16 %v41, %v40
    %v55 = vpack.c.bf16 %v43, %v42
    %v56 = vpack.c.bf16 %v45, %v44
    %v58 = vlaneseq
    %v59 = vshrl.u32 %v58, 7
    %v60 = vsub.s32 0, %v59
    %v61 = vrot.slane %v48, %v60
    %v65 = vunpack.c.l.b16 %v46
    %v66 = vunpack.c.l.b16 %v47
    %v67 = vpack.c.b16 %v66, %v65
    %vm69 = vcmask 130048
    %v71 = vsel %vm69, %v49, 0
    %v74 = vsel %vm69, %v50, 0
    %v77 = vsel %vm69, %v51, 0
    %v80 = vsel %vm69, %v52, 0
    %v83 = vsel %vm69, %v53, 0
    %v86 = vsel %vm69, %v54, 0
    %v89 = vsel %vm69, %v55, 0
    %v92 = vsel %vm69, %v56, 0
    %94 = vmatprep.subr.bf16.mxu0 0
    %95 = vmatpush1.bf16.msra.mxu0 %v67
    %96 = vmatprep.subr.bf16.mxu0 0
    %97 = vmatpush1.bf16.msra.mxu0 0
    %98 = vmatprep.subr.bf16.mxu0 0
    %99 = vmatpush1.bf16.msra.mxu0 0
    %100 = vmatprep.subr.bf16.mxu0 0
    %101 = vmatpush1.bf16.msra.mxu0 0
    %102 = vmatprep.subr.bf16.mxu0 0
    %103 = vmatpush1.bf16.msra.mxu0 0
    %104 = vmatprep.subr.bf16.mxu0 0
    %105 = vmatpush1.bf16.msra.mxu0 0
    %106 = vmatprep.subr.bf16.mxu0 0
    %107 = vmatpush1.bf16.msra.mxu0 0
    %108 = vmatprep.subr.bf16.mxu0 0
    %109 = vmatpush1.bf16.msra.mxu0 0
    %110 = vmatprep.subr.bf16.mxu0 0
    %111 = vmatpush1.bf16.msra.mxu0 0
    %112 = vmatprep.subr.bf16.mxu0 0
    %113 = vmatpush1.bf16.msra.mxu0 0
    %114 = vmatprep.subr.bf16.mxu0 0
    %115 = vmatpush1.bf16.msra.mxu0 0
    %116 = vmatprep.subr.bf16.mxu0 0
    %117 = vmatpush1.bf16.msra.mxu0 0
    %118 = vmatprep.subr.bf16.mxu0 0
    %119 = vmatpush1.bf16.msra.mxu0 0
    %120 = vmatprep.subr.bf16.mxu0 0
    %121 = vmatpush1.bf16.msra.mxu0 0
    %122 = vmatprep.subr.bf16.mxu0 0
    %123 = vmatpush1.bf16.msra.mxu0 0
    %124 = vmatprep.subr.bf16.mxu0 0
    %125 = vmatpush1.bf16.msra.mxu0 0
    %126 = vmatprep.mubr.bf16.mxu0 0
    %127 = vmatmul.mubr.bf16.gmra.mrb[0].mxu0 %v71
    %v128 = vpop.f32.mrb[0].mxu0
    %v129 = vadd.f32 %v61, %v128
    %v130 = vpop.f32.mrb[0].mxu0
    %v131 = vpop.f32.mrb[0].mxu0
    %v132 = vadd.f32 %v61, %v131
    %v133 = vpop.f32.mrb[0].mxu0
    %134 = vmatprep.mubr.bf16.mxu0 0
    %135 = vmatmul.mubr.bf16.gmra.mrb[0].mxu0 %v74
    %v136 = vpop.f32.mrb[0].mxu0
    %v137 = vadd.f32 %v61, %v136
    %v138 = vpop.f32.mrb[0].mxu0
    %v139 = vpop.f32.mrb[0].mxu0
    %v140 = vadd.f32 %v61, %v139
    %v141 = vpop.f32.mrb[0].mxu0
    %142 = vmatprep.mubr.bf16.mxu0 0
    %143 = vmatmul.mubr.bf16.gmra.mrb[0].mxu0 %v77
    %v144 = vpop.f32.mrb[0].mxu0
    %v145 = vadd.f32 %v61, %v144
    %v146 = vpop.f32.mrb[0].mxu0
    %v147 = vpop.f32.mrb[0].mxu0
    %v148 = vadd.f32 %v61, %v147
    %v149 = vpop.f32.mrb[0].mxu0
    %150 = vmatprep.mubr.bf16.mxu0 0
    %151 = vmatmul.mubr.bf16.gmra.mrb[0].mxu0 %v80
    %v152 = vpop.f32.mrb[0].mxu0
    %v153 = vadd.f32 %v61, %v152
    %v154 = vpop.f32.mrb[0].mxu0
    %v155 = vpop.f32.mrb[0].mxu0
    %v156 = vadd.f32 %v61, %v155
    %v157 = vpop.f32.mrb[0].mxu0
    %158 = vmatprep.mubr.bf16.mxu0 0
    %159 = vmatmul.mubr.bf16.gmra.mrb[0].mxu0 %v83
    %v160 = vpop.f32.mrb[0].mxu0
    %v161 = vadd.f32 %v61, %v160
    %v162 = vpop.f32.mrb[0].mxu0
    %v163 = vpop.f32.mrb[0].mxu0
    %v164 = vadd.f32 %v61, %v163
    %v165 = vpop.f32.mrb[0].mxu0
    %166 = vmatprep.mubr.bf16.mxu0 0
    %167 = vmatmul.mubr.bf16.gmra.mrb[0].mxu0 %v86
    %v168 = vpop.f32.mrb[0].mxu0
    %v169 = vadd.f32 %v61, %v168
    %v170 = vpop.f32.mrb[0].mxu0
    %v171 = vpop.f32.mrb[0].mxu0
    %v172 = vadd.f32 %v61, %v171
    %v173 = vpop.f32.mrb[0].mxu0
    %174 = vmatprep.mubr.bf16.mxu0 0
    %175 = vmatmul.mubr.bf16.gmra.mrb[0].mxu0 %v89
    %v176 = vpop.f32.mrb[0].mxu0
    %v177 = vadd.f32 %v61, %v176
    %v178 = vpop.f32.mrb[0].mxu0
    %v179 = vpop.f32.mrb[0].mxu0
    %v180 = vadd.f32 %v61, %v179
    %v181 = vpop.f32.mrb[0].mxu0
    %182 = vmatprep.mubr.bf16.mxu0 0
    %183 = vmatmul.mubr.bf16.gmra.mrb[0].mxu0 %v92
    %v184 = vpop.f32.mrb[0].mxu0
    %v185 = vadd.f32 %v61, %v184
    %v186 = vpop.f32.mrb[0].mxu0
    %v187 = vpop.f32.mrb[0].mxu0
    %v188 = vadd.f32 %v61, %v187
    %v189 = vpop.f32.mrb[0].mxu0
    %190 = vdwg.mxu0
    %v191 = vtanh.pop %v129
    %v192 = vtanh.pop %v132
    %v193 = vtanh.pop %v137
    %v194 = vtanh.pop %v140
    %v195 = vtanh.pop %v145
    %v196 = vtanh.pop %v148
    %v197 = vtanh.pop %v153
    %v198 = vtanh.pop %v156
    %v199 = vtanh.pop %v161
    %v200 = vtanh.pop %v164
    %v201 = vtanh.pop %v169
    %v202 = vtanh.pop %v172
    %v203 = vtanh.pop %v177
    %v204 = vtanh.pop %v180
    %v205 = vtanh.pop %v185
    %v206 = vtanh.pop %v188
    %v207 = vld [vmem:[%s3] sm:$0xf]
    %v208 = vld [vmem:[%s3 + $0x4] sm:$0xf]
    %v209 = vld [vmem:[%s3 + $0x8] sm:$0xf]
    %v210 = vld [vmem:[%s3 + $0xc] sm:$0xf]
    %v211 = vld [vmem:[%s3 + $0x10] sm:$0xf]
    %v212 = vld [vmem:[%s3 + $0x14] sm:$0xf]
    %v213 = vld [vmem:[%s3 + $0x18] sm:$0xf]
    %v214 = vld [vmem:[%s3 + $0x1c] sm:$0xf]
    %v215 = vld [vmem:[%s3 + $0x20] sm:$0xf]
    %v216 = vld [vmem:[%s3 + $0x24] sm:$0xf]
    %v217 = vld [vmem:[%s3 + $0x28] sm:$0xf]
    %v218 = vld [vmem:[%s3 + $0x2c] sm:$0xf]
    %v219 = vld [vmem:[%s3 + $0x30] sm:$0xf]
    %v220 = vld [vmem:[%s3 + $0x34] sm:$0xf]
    %v221 = vld [vmem:[%s3 + $0x38] sm:$0xf]
    %v222 = vld [vmem:[%s3 + $0x3c] sm:$0xf]
    %v223 = vld [vmem:[%s4] sm:$0x1]
    %v224 = vpack.c.bf16 %v192, %v191
    %v225 = vpack.c.bf16 %v194, %v193
    %v226 = vpack.c.bf16 %v196, %v195
    %v227 = vpack.c.bf16 %v198, %v197
    %v228 = vpack.c.bf16 %v200, %v199
    %v229 = vpack.c.bf16 %v202, %v201
    %v230 = vpack.c.bf16 %v204, %v203
    %v231 = vpack.c.bf16 %v206, %v205
    %v233 = vlaneseq
    %v234 = vshrl.u32 %v233, 7
    %v235 = vsub.s32 0, %v234
    %v236 = vrot.slane %v223, %v235
    %v254 = vunpack.c.l.b16 %v207
    %v255 = vunpack.c.l.b16 %v208
    %v256 = vunpack.c.l.b16 %v209
    %v257 = vunpack.c.l.b16 %v210
    %v258 = vunpack.c.l.b16 %v211
    %v259 = vunpack.c.l.b16 %v212
    %v260 = vunpack.c.l.b16 %v213
    %v261 = vunpack.c.l.b16 %v214
    %v262 = vunpack.c.l.b16 %v215
    %v263 = vunpack.c.l.b16 %v216
    %v264 = vunpack.c.l.b16 %v217
    %v265 = vunpack.c.l.b16 %v218
    %v266 = vunpack.c.l.b16 %v219
    %v267 = vunpack.c.l.b16 %v220
    %v268 = vunpack.c.l.b16 %v221
    %v269 = vunpack.c.l.b16 %v222
    %v270 = vpack.c.b16 %v255, %v254
    %v271 = vpack.c.b16 %v257, %v256
    %v272 = vpack.c.b16 %v259, %v258
    %v273 = vpack.c.b16 %v261, %v260
    %v274 = vpack.c.b16 %v263, %v262
    %v275 = vpack.c.b16 %v265, %v264
    %v276 = vpack.c.b16 %v267, %v266
    %v277 = vpack.c.b16 %v269, %v268
    %286 = vmatprep.subr.bf16.mxu0 0
    %287 = vmatpush1.bf16.msra.mxu0 %v270
    %288 = vmatprep.subr.bf16.mxu0 0
    %289 = vmatpush1.bf16.msra.mxu0 %v271
    %290 = vmatprep.subr.bf16.mxu0 0
    %291 = vmatpush1.bf16.msra.mxu0 %v272
    %292 = vmatprep.subr.bf16.mxu0 0
    %293 = vmatpush1.bf16.msra.mxu0 %v273
    %294 = vmatprep.subr.bf16.mxu0 0
    %295 = vmatpush1.bf16.msra.mxu0 %v274
    %296 = vmatprep.subr.bf16.mxu0 0
    %297 = vmatpush1.bf16.msra.mxu0 %v275
    %298 = vmatprep.subr.bf16.mxu0 0
    %299 = vmatpush1.bf16.msra.mxu0 %v276
    %300 = vmatprep.subr.bf16.mxu0 0
    %301 = vmatpush1.bf16.msra.mxu0 %v277
    %302 = vmatprep.subr.bf16.mxu0 0
    %303 = vmatpush1.bf16.msra.mxu0 0
    %304 = vmatprep.subr.bf16.mxu0 0
    %305 = vmatpush1.bf16.msra.mxu0 0
    %306 = vmatprep.subr.bf16.mxu0 0
    %307 = vmatpush1.bf16.msra.mxu0 0
    %308 = vmatprep.subr.bf16.mxu0 0
    %309 = vmatpush1.bf16.msra.mxu0 0
    %310 = vmatprep.subr.bf16.mxu0 0
    %311 = vmatpush1.bf16.msra.mxu0 0
    %312 = vmatprep.subr.bf16.mxu0 0
    %313 = vmatpush1.bf16.msra.mxu0 0
    %314 = vmatprep.subr.bf16.mxu0 0
    %315 = vmatpush1.bf16.msra.mxu0 0
    %316 = vmatprep.subr.bf16.mxu0 0
    %317 = vmatpush1.bf16.msra.mxu0 0
    %318 = vmatprep.mubr.bf16.mxu0 0
    %319 = vmatmul.mubr.bf16.gmra.mrb[0].mxu0 %v224
    %v320 = vpop.f32.mrb[0].mxu0
    %v321 = vadd.f32 %v236, %v320
    %v322 = vpop.f32.mrb[0].mxu0
    %v323 = vpop.f32.mrb[0].mxu0
    %v324 = vadd.f32 %v236, %v323
    %v325 = vpop.f32.mrb[0].mxu0
    %326 = vmatprep.mubr.bf16.mxu0 0
    %327 = vmatmul.mubr.bf16.gmra.mrb[0].mxu0 %v225
    %v328 = vpop.f32.mrb[0].mxu0
    %v329 = vadd.f32 %v236, %v328
    %v330 = vpop.f32.mrb[0].mxu0
    %v331 = vpop.f32.mrb[0].mxu0
    %v332 = vadd.f32 %v236, %v331
    %v333 = vpop.f32.mrb[0].mxu0
    %334 = vmatprep.mubr.bf16.mxu0 0
    %335 = vmatmul.mubr.bf16.gmra.mrb[0].mxu0 %v226
    %v336 = vpop.f32.mrb[0].mxu0
    %v337 = vadd.f32 %v236, %v336
    %v338 = vpop.f32.mrb[0].mxu0
    %v339 = vpop.f32.mrb[0].mxu0
    %v340 = vadd.f32 %v236, %v339
    %v341 = vpop.f32.mrb[0].mxu0
    %342 = vmatprep.mubr.bf16.mxu0 0
    %343 = vmatmul.mubr.bf16.gmra.mrb[0].mxu0 %v227
    %v344 = vpop.f32.mrb[0].mxu0
    %v345 = vadd.f32 %v236, %v344
    %v346 = vpop.f32.mrb[0].mxu0
    %v347 = vpop.f32.mrb[0].mxu0
    %v348 = vadd.f32 %v236, %v347
    %v349 = vpop.f32.mrb[0].mxu0
    %350 = vmatprep.mubr.bf16.mxu0 0
    %351 = vmatmul.mubr.bf16.gmra.mrb[0].mxu0 %v228
    %v352 = vpop.f32.mrb[0].mxu0
    %v353 = vadd.f32 %v236, %v352
    %v354 = vpop.f32.mrb[0].mxu0
    %v355 = vpop.f32.mrb[0].mxu0
    %v356 = vadd.f32 %v236, %v355
    %v357 = vpop.f32.mrb[0].mxu0
    %358 = vmatprep.mubr.bf16.mxu0 0
    %359 = vmatmul.mubr.bf16.gmra.mrb[0].mxu0 %v229
    %v360 = vpop.f32.mrb[0].mxu0
    %v361 = vadd.f32 %v236, %v360
    %v362 = vpop.f32.mrb[0].mxu0
    %v363 = vpop.f32.mrb[0].mxu0
    %v364 = vadd.f32 %v236, %v363
    %v365 = vpop.f32.mrb[0].mxu0
    %366 = vmatprep.mubr.bf16.mxu0 0
    %367 = vmatmul.mubr.bf16.gmra.mrb[0].mxu0 %v230
    %v368 = vpop.f32.mrb[0].mxu0
    %v369 = vadd.f32 %v236, %v368
    %v370 = vpop.f32.mrb[0].mxu0
    %v371 = vpop.f32.mrb[0].mxu0
    %v372 = vadd.f32 %v236, %v371
    %v373 = vpop.f32.mrb[0].mxu0
    %374 = vmatprep.mubr.bf16.mxu0 0
    %375 = vmatmul.mubr.bf16.gmra.mrb[0].mxu0 %v231
    %v376 = vpop.f32.mrb[0].mxu0
    %v377 = vadd.f32 %v236, %v376
    %v378 = vpop.f32.mrb[0].mxu0
    %v379 = vpop.f32.mrb[0].mxu0
    %v380 = vadd.f32 %v236, %v379
    %v381 = vpop.f32.mrb[0].mxu0
    %382 = vdwg.mxu0
    %v383 = vtanh.pop %v321
    %v384 = vtanh.pop %v324
    %v385 = vtanh.pop %v329
    %v386 = vtanh.pop %v332
    %v387 = vtanh.pop %v337
    %v388 = vtanh.pop %v340
    %v389 = vtanh.pop %v345
    %v390 = vtanh.pop %v348
    %v391 = vtanh.pop %v353
    %v392 = vtanh.pop %v356
    %v393 = vtanh.pop %v361
    %v394 = vtanh.pop %v364
    %v395 = vtanh.pop %v369
    %v396 = vtanh.pop %v372
    %v397 = vtanh.pop %v377
    %v398 = vtanh.pop %v380
    %v399 = vld [vmem:[%s5] sm:$0x1]
    %v400 = vld [vmem:[#allocation2] sm:$0x1]
    %v401 = vpack.c.bf16 %v384, %v383
    %v402 = vpack.c.bf16 %v386, %v385
    %v403 = vpack.c.bf16 %v388, %v387
    %v404 = vpack.c.bf16 %v390, %v389
    %v405 = vpack.c.bf16 %v392, %v391
    %v406 = vpack.c.bf16 %v394, %v393
    %v407 = vpack.c.bf16 %v396, %v395
    %v408 = vpack.c.bf16 %v398, %v397
    %410 = vset.pattern.permute.xlu0 0
    %411 = vperm.xlu0 %410, %v400
    %v412 = vpop.permute.xlu0 %411
    %v414 = vlaneseq
    %v415 = vshrl.u32 %v414, 7
    %v416 = vsub.s32 0, %v415
    %v417 = vrot.slane %v412, %v416
    %418 = vmatprep.subr.bf16.mxu0 0
    %419 = vmatpush1.bf16.xpose.msra.mxu0 %v401
    %420 = vmatprep.subr.bf16.mxu0 0
    %421 = vmatpush1.bf16.xpose.msra.mxu0 %v402
    %422 = vmatprep.subr.bf16.mxu0 0
    %423 = vmatpush1.bf16.xpose.msra.mxu0 %v403
    %424 = vmatprep.subr.bf16.mxu0 0
    %425 = vmatpush1.bf16.xpose.msra.mxu0 %v404
    %426 = vmatprep.subr.bf16.mxu0 0
    %427 = vmatpush1.bf16.xpose.msra.mxu0 %v405
    %428 = vmatprep.subr.bf16.mxu0 0
    %429 = vmatpush1.bf16.xpose.msra.mxu0 %v406
    %430 = vmatprep.subr.bf16.mxu0 0
    %431 = vmatpush1.bf16.xpose.msra.mxu0 %v407
    %432 = vmatprep.subr.bf16.mxu0 0
    %433 = vmatpush1.bf16.xpose.msra.mxu0 %v408
    %434 = vmatprep.subr.bf16.mxu0 0
    %435 = vmatpush1.bf16.xpose.msra.mxu0 0
    %436 = vmatprep.subr.bf16.mxu0 0
    %437 = vmatpush1.bf16.xpose.msra.mxu0 0
    %438 = vmatprep.subr.bf16.mxu0 0
    %439 = vmatpush1.bf16.xpose.msra.mxu0 0
    %440 = vmatprep.subr.bf16.mxu0 0
    %441 = vmatpush1.bf16.xpose.msra.mxu0 0
    %442 = vmatprep.subr.bf16.mxu0 0
    %443 = vmatpush1.bf16.xpose.msra.mxu0 0
    %444 = vmatprep.subr.bf16.mxu0 0
    %445 = vmatpush1.bf16.xpose.msra.mxu0 0
    %446 = vmatprep.subr.bf16.mxu0 0
    %447 = vmatpush1.bf16.xpose.msra.mxu0 0
    %448 = vmatprep.subr.bf16.mxu0 0
    %449 = vmatpush1.bf16.xpose.msra.mxu0 0
    %450 = vmatprep.mubr.bf16.mxu0 0
    %451 = vmatmul.mubr.bf16.gmra.mrb[0].mxu0 %v399
    %v452 = vpop.f32.mrb[0].mxu0
    %v453 = vadd.f32 %v417, %v452
    %v454 = vpop.f32.mrb[0].mxu0
    %v455 = vpop.f32.mrb[0].mxu0
    %v456 = vpop.f32.mrb[0].mxu0
    %457 = vdwg.mxu0
    %458 = vst [vmem:[#allocation3] sm:$0x1] %v453
    // Predicated region
    $region30: #{tpu_custom_call.1} parent=1 // pred_check
      _
    $region31: #{tpu_custom_call.1} parent=1 // pred_check_branch
      %460 = sbr.rel (0) target = $region33
    $region32: #{tpu_custom_call.1} parent=1 // pred_region
      %s462 = ssub.s32 16, 16
      %463 = vsyncadd [#allocation4], %s462
      %s465 = sshll.u32 [#allocation3], 4
      %s466 = int_to_ptr.vmem [resolvable:$true] %s465
      %468 = dma.vmem_to_hbm [thread:$0]  %s466, 16, %s7, [#allocation4]
    $region33: #{tpu_custom_call.1} parent=1 // pred_fallthru
      _
    // Predicated region
    $region34: #{tpu_custom_call.1} parent=1 // pred_check
      _
    $region35: #{tpu_custom_call.1} parent=1 // pred_check_branch
      %470 = sbr.rel (0) target = $region37
    $region36: #{tpu_custom_call.1} parent=1 // pred_region
      %471 = dma.done [#allocation4], 16
    $region37: #{tpu_custom_call.1} parent=1 // pred_fallthru
      _
    %472 = vsyncpa [#allocation4], 1

</llo_original>
